<compile_context>
chip_gen: v5e
topology: v5e:2x2
jax: 0.10.0
libtpu: 0.0.40
codegen_flags: <defaults>
</compile_context>

<pallas_src>
import jax
import jax.numpy as jnp
from jax.experimental import pallas as pl
from jax.experimental.pallas import tpu as pltpu

_SELU_ALPHA = 1.6732632423543772
_SELU_SCALE = 1.0507009873554805
_LANE = 128  # attn / context L tiles stay lane-dense (multiples of 128)


# ----------------------------------------------------------------------------- kernel
def _self_attention2_kernel(ctx_ref, w_in_ref, b_in_ref, u_w_ref, h_ref, attn_ref):
    """One (core-split c, L-tile l) grid step."""

    @pl.when(pl.program_id(1) == 0)
    def _init():
        h_ref[...] = jnp.zeros_like(h_ref)

    ctx = ctx_ref[...]                                   # (B, TL, D), f32 or bf16
    B, TL, D = ctx.shape

    # u = selu(linear_in(context)): one (B*TL, D) @ (D, D) MXU matmul, f32 accum.
    x2 = ctx.reshape(B * TL, D)
    u2 = jnp.dot(x2, w_in_ref[...], preferred_element_type=jnp.float32)
    u2 = u2 + b_in_ref[...]                              # (1, D) f32 bias broadcast
    # Branch-free SELU; exp(min(x,0)) avoids inf intermediates for large positives.
    u2 = _SELU_SCALE * (jnp.maximum(u2, 0.0)
                        + _SELU_ALPHA * (jnp.exp(jnp.minimum(u2, 0.0)) - 1.0))

    # scores = (u @ u_w).squeeze(2), kept in "column" (sublane) layout so neither
    # the softmax stats nor the context weighting relayout the (B, TL, D) block.
    scores = jnp.sum(u2 * u_w_ref[...], axis=-1, keepdims=True)     # (B*TL, 1)
    scores = scores.reshape(B, TL, 1)

    # Softmax over the BATCH axis (dim=0), per source position, as in the module.
    m = jnp.max(scores, axis=0, keepdims=True)           # (1, TL, 1)
    e = jnp.exp(scores - m)                              # (B, TL, 1)
    denom = jnp.sum(e, axis=0, keepdims=True)            # (1, TL, 1)  (>= 1)
    attn = e / denom                                     # exact divide (h_tilde accuracy)

    # h_tilde partial: sum_l attn[b, l] * context[b, l, :] over this L tile.
    # attn is a column -> lane-broadcast against ctx; zero-padded L rows give 0.
    h_ref[...] += jnp.sum(attn * ctx, axis=1).astype(h_ref.dtype)   # (B, D)

    # Lane-dense (B, TL) slab store (relayouts only B*TL scalars, once per tile).
    attn_ref[...] = attn[..., 0].astype(attn_ref.dtype)


# ----------------------------------------------------------------------------- planning
def _tpu_info():
    try:
        return pltpu.get_tpu_info()
    except Exception:
        return None  # e.g. interpret mode / no TPU visible at trace time


def _vmem_budget_bytes():
    info = _tpu_info()
    phys = getattr(info, "vmem_capacity_bytes", None) if info is not None else None
    if not phys:
        phys = 64 << 20  # conservative default (v7x per-core VMEM)
    # ~75% of physical, capped: ≈48 MiB plan on v7x (64 MiB), ≈96 MiB on v5e/v6e (128 MiB).
    return max(min(int(phys) * 3 // 4, 100 << 20), 16 << 20)


def _num_tensorcores():
    # TODO(synk): TpuInfo core-count attribute name may differ across jax
    # versions; fall back to 1 (single-core path) if it cannot be probed.
    info = _tpu_info()
    if info is None:
        return 1
    for name in ("num_cores", "core_count", "num_tensorcores"):
        v = getattr(info, name, None)
        if isinstance(v, int) and 1 <= v <= 8:
            return v
    return 1


def _pick_l_tile(B, Lp, D, ctx_itemsize, w_itemsize, budget_bytes):
    """Largest 128-multiple L tile whose full VMEM plan fits the budget."""
    for mult in range(Lp // _LANE, 0, -1):
        tl = mult * _LANE
        if Lp % tl:
            continue
        plan = (2 * B * tl * D * ctx_itemsize      # context tile, double-buffered
                + 3 * B * tl * D * 4               # in-kernel f32 intermediates (u, upcast, weighted)
                + 2 * B * tl * 4                   # attn output tile, double-buffered
                + 1 * D * D * w_itemsize           # weight, single-buffered (pl.Buffered(1))
                + 2 * B * D * 4                    # resident partial-h output
                + 4 * 8 * max(D, 128) * 4)         # bias / u_w rows + tiling slack
        if plan <= budget_bytes:
            return tl
    # TODO(synk): if even a single 128-tile overflows the budget, tile D as well.
    return _LANE


def _const_spec(shape):
    """BlockSpec for operands whose block never changes: keep them VMEM-resident
    and single-buffered (double-buffering a constant block only burns VMEM)."""
    index_map = lambda c, l: tuple(0 for _ in shape)
    try:
        return pl.BlockSpec(shape, index_map, pipeline_mode=pl.Buffered(1))
    except Exception:  # older jax without pipeline_mode / Buffered: default buffering
        return pl.BlockSpec(shape, index_map)


# ----------------------------------------------------------------------------- wrapper
def self_attention2(inp, context, w_in_t, b_in, u_w):
    """Pallas forward for SelfAttention2.

    inp:     (B, D)   -- unused by the reference forward (kept for signature parity)
    context: (B, L, D) f32 or bf16 (bf16 halves HBM/VMEM traffic; math stays f32)
    w_in_t:  (D, D)   -- linear_in weight pre-transposed so x @ w_in_t == linear_in(x)
    b_in:    (D,)     -- linear_in bias
    u_w:     (D, 1)
    returns: h_tilde (B, D) f32, attn (B, 1, L) f32
    """
    del inp  # SelfAttention2.forward never uses `input`
    B, L, D = context.shape

    # Pad L to a multiple of 128: lane-dense attn stores, no full-L VMEM fallback.
    # Zero-padded context rows contribute exactly 0 to h_tilde; padded attn
    # columns are sliced off below, so no extra masking is required.
    Lp = -(-L // _LANE) * _LANE
    ctx_p = context if Lp == L else jnp.pad(context, ((0, 0), (0, Lp - L), (0, 0)))

    budget = _vmem_budget_bytes()
    tl = _pick_l_tile(B, Lp, D, ctx_p.dtype.itemsize, w_in_t.dtype.itemsize, budget)
    nt = Lp // tl

    # v7x: split the L-tile range across both TensorCores ("parallel" leading
    # axis) and emit per-core partial h_tilde, summed below.  Size-1 elsewhere.
    cores = _num_tensorcores()
    C = cores if (cores > 1 and nt % cores == 0) else 1
    npc = nt // C

    b_in_row = b_in.reshape(1, D).astype(jnp.float32)
    u_w_row = u_w.reshape(1, D).astype(jnp.float32)      # (D, 1) -> row vector

    in_specs = [
        # Streaming context tile (whole batch x one L tile).  If profiling shows
        # exposed DMA, deepen with pipeline_mode=pl.Buffered(3) and re-check the
        # VMEM plan above.
        pl.BlockSpec((B, tl, D), lambda c, l: (0, c * npc + l, 0)),
        _const_spec((D, D)),   # linear_in weight (resident, single-buffered)
        _const_spec((1, D)),   # linear_in bias
        _const_spec((1, D)),   # u_w row
    ]
    out_specs = (
        pl.BlockSpec((None, B, D), lambda c, l: (c, 0, 0)),    # per-core partial h (resident accumulator)
        pl.BlockSpec((B, tl), lambda c, l: (0, c * npc + l)),  # lane-dense attn slab per L tile
    )

    h_parts, attn = pl.pallas_call(
        _self_attention2_kernel,
        out_shape=(
            jax.ShapeDtypeStruct((C, B, D), jnp.float32),
            jax.ShapeDtypeStruct((B, Lp), jnp.float32),
        ),
        grid=(C, npc),
        in_specs=in_specs,
        out_specs=out_specs,
        compiler_params=pltpu.CompilerParams(
            dimension_semantics=("parallel", "arbitrary"),  # L tiles reduce into h
            vmem_limit_bytes=int(budget),
        ),
    )(ctx_p, w_in_t, b_in_row, u_w_row)

    h_tilde = h_parts.sum(axis=0)                  # combine per-core partials
    return h_tilde, attn[:, :L][:, None, :]        # attn shaped (B, 1, L) like torch


# ----------------------------------------------------------------------------- reference
def self_attention2_ref(inp, context, w_in_t, b_in, u_w):
    """Pure-JAX reference mirroring the PyTorch forward (f32 math)."""
    del inp
    ctx = context.astype(jnp.float32)
    u = jax.nn.selu(ctx @ w_in_t.astype(jnp.float32) + b_in)   # (B, L, D)
    scores = jnp.squeeze(u @ u_w, axis=2)                      # (B, L)
    attn = jax.nn.softmax(scores, axis=0)                      # softmax over batch (dim=0)
    h_tilde = jnp.einsum("bl,bld->bd", attn, ctx)              # (B, D)
    return h_tilde, attn[:, None, :]


if __name__ == "__main__":
    B, L, D = 2, 8, 32

    key = jax.random.PRNGKey(0)
    k_in, k_ctx, k_w, k_b, k_u = jax.random.split(key, 5)

    inp = jax.random.normal(k_in, (B, D), dtype=jnp.float32)        # unused by forward
    context = jax.random.normal(k_ctx, (B, L, D), dtype=jnp.float32)
    w_in_t = jax.random.normal(k_w, (D, D), dtype=jnp.float32) * (D ** -0.5)
    b_in = jax.random.normal(k_b, (D,), dtype=jnp.float32) * 0.1
    u_w = jax.random.normal(k_u, (D, 1), dtype=jnp.float32)

    # --- f32 path: exact softmax divide -> tight match to the reference ------
    h_tilde, attn = self_attention2(inp, context, w_in_t, b_in, u_w)
    jax.block_until_ready((h_tilde, attn))
    h_ref, attn_ref = self_attention2_ref(inp, context, w_in_t, b_in, u_w)

    assert h_tilde.shape == (B, D) and attn.shape == (B, 1, L)
    assert jnp.allclose(attn, attn_ref, atol=2e-3, rtol=2e-3), \
        float(jnp.max(jnp.abs(attn - attn_ref)))
    assert jnp.allclose(h_tilde, h_ref, atol=2e-3, rtol=2e-3), \
        float(jnp.max(jnp.abs(h_tilde - h_ref)))

    # --- bf16 streaming path (halves HBM bytes; kernel math stays f32) -------
    ctx_bf16 = context.astype(jnp.bfloat16)
    w_bf16 = w_in_t.astype(jnp.bfloat16)
    h_bf, attn_bf = self_attention2(inp, ctx_bf16, w_bf16, b_in, u_w)
    jax.block_until_ready((h_bf, attn_bf))
    h_ref_bf, attn_ref_bf = self_attention2_ref(inp, ctx_bf16, w_bf16, b_in, u_w)

    assert jnp.allclose(attn_bf, attn_ref_bf, atol=1e-2, rtol=1e-2), \
        float(jnp.max(jnp.abs(attn_bf - attn_ref_bf)))
    assert jnp.allclose(h_bf, h_ref_bf, atol=1e-2, rtol=1e-2), \
        float(jnp.max(jnp.abs(h_bf - h_ref_bf)))

    print("KERNEL_OK")
</pallas_src>

<mosaic_0001>
module attributes {stable_mosaic.version = 11 : i64} {
  func.func @_self_attention2_kernel(%arg0: i32, %arg1: i32, %arg2: memref<2x128x32xf32, #tpu.memory_space<vmem>>, %arg3: memref<32x32xf32, #tpu.memory_space<vmem>>, %arg4: memref<1x32xf32, #tpu.memory_space<vmem>>, %arg5: memref<1x32xf32, #tpu.memory_space<vmem>>, %arg6: memref<1x2x32xf32, #tpu.memory_space<vmem>>, %arg7: memref<2x128xf32, #tpu.memory_space<vmem>>) attributes {dimension_semantics = [#tpu.dimension_semantics<parallel>, #tpu.dimension_semantics<arbitrary>], iteration_bounds = array<i64: 1, 1>, scalar_prefetch = 0 : i64, scratch_operands = 0 : i64, tpu.core_type = #tpu.core_type<tc>, window_params = [{transform_indices = @transform_0, window_bounds = array<i64: 2, 128, 32>}, {pipeline_mode = #tpu.pipeline_mode<synchronous>, transform_indices = @transform_1, window_bounds = array<i64: 32, 32>}, {pipeline_mode = #tpu.pipeline_mode<synchronous>, transform_indices = @transform_2, window_bounds = array<i64: 1, 32>}, {pipeline_mode = #tpu.pipeline_mode<synchronous>, transform_indices = @transform_3, window_bounds = array<i64: 1, 32>}, {transform_indices = @transform_4, window_bounds = array<i64: 1, 2, 32>}, {transform_indices = @transform_5, window_bounds = array<i64: 2, 128>}]} {
    %c0_i32 = arith.constant 0 : i32
    %0 = arith.cmpi eq, %arg1, %c0_i32 : i32
    %1 = arith.extui %0 : i1 to i32
    %c0_i32_0 = arith.constant 0 : i32
    %2 = arith.cmpi ne, %1, %c0_i32_0 : i32
    scf.if %2 {
      %cst_26 = arith.constant 0.000000e+00 : f32
      %48 = vector.broadcast %cst_26 : f32 to vector<2x32xf32>
      %c0_27 = arith.constant 0 : index
      %c0_28 = arith.constant 0 : index
      %c0_29 = arith.constant 0 : index
      %49 = vector.load %arg6[%c0_27, %c0_28, %c0_29] : memref<1x2x32xf32, #tpu.memory_space<vmem>>, vector<1x2x32xf32>
      %50 = vector.shape_cast %49 : vector<1x2x32xf32> to vector<2x32xf32>
      %51 = vector.shape_cast %48 : vector<2x32xf32> to vector<1x2x32xf32>
      tpu.vector_store %arg6[%c0_27, %c0_28, %c0_29], %51 {strides = array<i32>} : memref<1x2x32xf32, #tpu.memory_space<vmem>>, vector<1x2x32xf32>,
    } else {
    }
    %c0 = arith.constant 0 : index
    %c0_1 = arith.constant 0 : index
    %c0_2 = arith.constant 0 : index
    %3 = vector.load %arg2[%c0, %c0_1, %c0_2] : memref<2x128x32xf32, #tpu.memory_space<vmem>>, vector<2x128x32xf32>
    %4 = vector.shape_cast %3 : vector<2x128x32xf32> to vector<256x32xf32>
    %c0_3 = arith.constant 0 : index
    %c0_4 = arith.constant 0 : index
    %5 = vector.load %arg3[%c0_3, %c0_4] : memref<32x32xf32, #tpu.memory_space<vmem>>, vector<32x32xf32>
    %cst = arith.constant dense<0.000000e+00> : vector<256x32xf32>
    %6 = tpu.matmul %4, %5, %cst {dimension_numbers = #tpu.dot_dimension_numbers<[1], [0], [0], [1], [0, 0, 1, 1], [], []>} : vector<256x32xf32>, vector<32x32xf32>, vector<256x32xf32> -> vector<256x32xf32>
    %c0_5 = arith.constant 0 : index
    %c0_6 = arith.constant 0 : index
    %7 = vector.load %arg4[%c0_5, %c0_6] : memref<1x32xf32, #tpu.memory_space<vmem>>, vector<1x32xf32>
    %8 = vector.broadcast %7 : vector<1x32xf32> to vector<256x32xf32>
    %9 = arith.addf %6, %8 : vector<256x32xf32>
    %cst_7 = arith.constant 0.000000e+00 : f32
    %10 = vector.broadcast %cst_7 : f32 to vector<256x32xf32>
    %11 = arith.maximumf %9, %10 : vector<256x32xf32>
    %cst_8 = arith.constant 0.000000e+00 : f32
    %12 = vector.broadcast %cst_8 : f32 to vector<256x32xf32>
    %13 = arith.minimumf %9, %12 : vector<256x32xf32>
    %14 = math.exp %13 : vector<256x32xf32>
    %cst_9 = arith.constant 1.000000e+00 : f32
    %15 = vector.broadcast %cst_9 : f32 to vector<256x32xf32>
    %16 = arith.subf %14, %15 : vector<256x32xf32>
    %cst_10 = arith.constant 1.67326319 : f32
    %17 = vector.broadcast %cst_10 : f32 to vector<256x32xf32>
    %18 = arith.mulf %17, %16 : vector<256x32xf32>
    %19 = arith.addf %11, %18 : vector<256x32xf32>
    %cst_11 = arith.constant 1.05070102 : f32
    %20 = vector.broadcast %cst_11 : f32 to vector<256x32xf32>
    %21 = arith.mulf %20, %19 : vector<256x32xf32>
    %c0_12 = arith.constant 0 : index
    %c0_13 = arith.constant 0 : index
    %22 = vector.load %arg5[%c0_12, %c0_13] : memref<1x32xf32, #tpu.memory_space<vmem>>, vector<1x32xf32>
    %23 = vector.broadcast %22 : vector<1x32xf32> to vector<256x32xf32>
    %24 = arith.mulf %21, %23 : vector<256x32xf32>
    %cst_14 = arith.constant dense<0.000000e+00> : vector<256xf32>
    %25 = vector.multi_reduction <add>, %24, %cst_14 [1] : vector<256x32xf32> to vector<256xf32>
    %26 = vector.shape_cast %25 : vector<256xf32> to vector<256x1xf32>
    %27 = vector.shape_cast %26 : vector<256x1xf32> to vector<2x128x1xf32>
    %cst_15 = arith.constant dense<0xFF800000> : vector<128x1xf32>
    %28 = vector.multi_reduction <maximumf>, %27, %cst_15 [0] : vector<2x128x1xf32> to vector<128x1xf32>
    %29 = vector.shape_cast %28 : vector<128x1xf32> to vector<1x128x1xf32>
    %30 = vector.broadcast %29 : vector<1x128x1xf32> to vector<2x128x1xf32>
    %31 = arith.subf %27, %30 : vector<2x128x1xf32>
    %32 = math.exp %31 : vector<2x128x1xf32>
    %cst_16 = arith.constant dense<0.000000e+00> : vector<128x1xf32>
    %33 = vector.multi_reduction <add>, %32, %cst_16 [0] : vector<2x128x1xf32> to vector<128x1xf32>
    %34 = vector.shape_cast %33 : vector<128x1xf32> to vector<1x128x1xf32>
    %35 = vector.broadcast %34 : vector<1x128x1xf32> to vector<2x128x1xf32>
    %36 = arith.divf %32, %35 : vector<2x128x1xf32>
    %c0_17 = arith.constant 0 : index
    %c0_18 = arith.constant 0 : index
    %c0_19 = arith.constant 0 : index
    %37 = vector.load %arg6[%c0_17, %c0_18, %c0_19] : memref<1x2x32xf32, #tpu.memory_space<vmem>>, vector<1x2x32xf32>
    %38 = vector.shape_cast %37 : vector<1x2x32xf32> to vector<2x32xf32>
    %39 = vector.broadcast %36 : vector<2x128x1xf32> to vector<2x128x32xf32>
    %40 = arith.mulf %39, %3 : vector<2x128x32xf32>
    %cst_20 = arith.constant dense<0.000000e+00> : vector<2x32xf32>
    %41 = vector.multi_reduction <add>, %40, %cst_20 [1] : vector<2x128x32xf32> to vector<2x32xf32>
    %42 = arith.addf %38, %41 : vector<2x32xf32>
    %c0_21 = arith.constant 0 : index
    %c0_22 = arith.constant 0 : index
    %c0_23 = arith.constant 0 : index
    %43 = vector.load %arg6[%c0_21, %c0_22, %c0_23] : memref<1x2x32xf32, #tpu.memory_space<vmem>>, vector<1x2x32xf32>
    %44 = vector.shape_cast %43 : vector<1x2x32xf32> to vector<2x32xf32>
    %45 = vector.shape_cast %42 : vector<2x32xf32> to vector<1x2x32xf32>
    tpu.vector_store %arg6[%c0_21, %c0_22, %c0_23], %45 {strides = array<i32>} : memref<1x2x32xf32, #tpu.memory_space<vmem>>, vector<1x2x32xf32>,
    %46 = vector.shape_cast %36 : vector<2x128x1xf32> to vector<2x128xf32>
    %c0_24 = arith.constant 0 : index
    %c0_25 = arith.constant 0 : index
    %47 = vector.load %arg7[%c0_24, %c0_25] : memref<2x128xf32, #tpu.memory_space<vmem>>, vector<2x128xf32>
    tpu.vector_store %arg7[%c0_24, %c0_25], %46 {strides = array<i32>} : memref<2x128xf32, #tpu.memory_space<vmem>>, vector<2x128xf32>,
    return
  }
  func.func @transform_0(%arg0: i32, %arg1: i32) -> (i32, i32, i32) {
    %c1_i32 = arith.constant 1 : i32
    %0 = arith.muli %arg0, %c1_i32 : i32
    %1 = arith.addi %0, %arg1 : i32
    %c0_i32 = arith.constant 0 : i32
    %c0_i32_0 = arith.constant 0 : i32
    %c0_i32_1 = arith.constant 0 : i32
    return %c0_i32, %1, %c0_i32_0 : i32, i32, i32
  }
  func.func @transform_1(%arg0: i32, %arg1: i32) -> (i32, i32) {
    %c0_i32 = arith.constant 0 : i32
    %c0_i32_0 = arith.constant 0 : i32
    %c0_i32_1 = arith.constant 0 : i32
    return %c0_i32, %c0_i32_0 : i32, i32
  }
  func.func @transform_2(%arg0: i32, %arg1: i32) -> (i32, i32) {
    %c0_i32 = arith.constant 0 : i32
    %c0_i32_0 = arith.constant 0 : i32
    %c0_i32_1 = arith.constant 0 : i32
    return %c0_i32, %c0_i32_0 : i32, i32
  }
  func.func @transform_3(%arg0: i32, %arg1: i32) -> (i32, i32) {
    %c0_i32 = arith.constant 0 : i32
    %c0_i32_0 = arith.constant 0 : i32
    %c0_i32_1 = arith.constant 0 : i32
    return %c0_i32, %c0_i32_0 : i32, i32
  }
  func.func @transform_4(%arg0: i32, %arg1: i32) -> (i32, i32, i32) {
    %c0_i32 = arith.constant 0 : i32
    %c0_i32_0 = arith.constant 0 : i32
    %c0_i32_1 = arith.constant 0 : i32
    return %arg0, %c0_i32, %c0_i32_0 : i32, i32, i32
  }
  func.func @transform_5(%arg0: i32, %arg1: i32) -> (i32, i32) {
    %c1_i32 = arith.constant 1 : i32
    %0 = arith.muli %arg0, %c1_i32 : i32
    %1 = arith.addi %0, %arg1 : i32
    %c0_i32 = arith.constant 0 : i32
    %c0_i32_0 = arith.constant 0 : i32
    return %c0_i32, %1 : i32, i32
  }
}

</mosaic_0001>

<llo_original>
// kernel: tpu_custom_call.1
$region0: #{tpu_custom_call.1}
  #allocation0 [shape = 'u32[]', space=smem, size = 0x4, offset = 0x4, fixed_abs, tag = 'smem constant byte address 0x4 - core index']
  #allocation1 [shape = 'u32[72,128]{1,0:T(1,128)}', space=vmem, size = 0x9000, scoped, tag = 'internal scratch']
  %s0 = inlined_call_operand.vmem [shape: f32[2,128,32], index: 0, kind: input, shape index: {}]
  %s1 = inlined_call_operand.vmem [shape: f32[32,32], index: 1, kind: input, shape index: {}]
  %s2 = inlined_call_operand.vmem [shape: f32[1,32], index: 2, kind: input, shape index: {}]
  %s3 = inlined_call_operand.vmem [shape: f32[1,32], index: 3, kind: input, shape index: {}]
  %s4 = inlined_call_operand.hbm [shape: f32[1,2,32], index: 4, kind: output, shape index: {0}]
  %s5 = inlined_call_operand.hbm [shape: f32[2,128], index: 5, kind: output, shape index: {1}]
  %6 = xla_tuple %s4, %s5
  %s7 = sld [smem:[#allocation0]]
  $region38: #{tpu_custom_call.1} parent=0
    _
  %s9 = ssub.s32 1, %s7
  %s10 = scalar_select 0, %s9, %s7
  $region1: #{tpu_custom_call.1} parent=0
    #allocation2 [shape = 'u8[1024]{0}', space=vmem, size = 0x400, scoped, tag = 'output window, operand 0, single buffered']
    #allocation3 [shape = 's32[1]{0}', space=sflag, size = 0x4, scoped, tag = 'scoped memory for tpu_custom_call.1']
    #allocation4 [shape = 'u8[1024]{0}', space=vmem, size = 0x400, scoped, tag = 'output window, operand 1, single buffered']
    #allocation5 [shape = 's32[1]{0}', space=sflag, size = 0x4, scoped, tag = 'scoped memory for tpu_custom_call.1']
    %11 = vsyncpa [#allocation3], 0
    %12 = vsyncpa [#allocation5], 0
    // Predicated region
    $region2: #{tpu_custom_call.1} parent=1 // pred_check
      _
    $region3: #{tpu_custom_call.1} parent=1 // pred_check_branch
      %14 = sbr.rel (0) target = $region5
    $region4: #{tpu_custom_call.1} parent=1 // pred_region
      %s15 = sadd.s32 0, 0
      %s16 = smul.u32 16, %s15
      %p17 = scmp.lt.s32.totalorder %s16, 15
      %s18 = scalar_select %p17, %s16, 15
      %s19 = smul.addr %s18, 8
      %s20 = scalar_lea.vmem %s0, %s19
      %s21 = sadd.s32 0, 0
      %s22 = smul.u32 16, %s21
    $region5: #{tpu_custom_call.1} parent=1 // pred_fallthru
      _
    // Predicated region
    $region6: #{tpu_custom_call.1} parent=1 // pred_check
      _
    $region7: #{tpu_custom_call.1} parent=1 // pred_check_branch
      %24 = sbr.rel (0) target = $region9
    $region8: #{tpu_custom_call.1} parent=1 // pred_region
      _
    $region9: #{tpu_custom_call.1} parent=1 // pred_fallthru
      _
    // Predicated region
    $region10: #{tpu_custom_call.1} parent=1 // pred_check
      _
    $region11: #{tpu_custom_call.1} parent=1 // pred_check_branch
      %26 = sbr.rel (0) target = $region13
    $region12: #{tpu_custom_call.1} parent=1 // pred_region
      _
    $region13: #{tpu_custom_call.1} parent=1 // pred_fallthru
      _
    // Predicated region
    $region14: #{tpu_custom_call.1} parent=1 // pred_check
      _
    $region15: #{tpu_custom_call.1} parent=1 // pred_check_branch
      %28 = sbr.rel (0) target = $region17
    $region16: #{tpu_custom_call.1} parent=1 // pred_region
      _
    $region17: #{tpu_custom_call.1} parent=1 // pred_fallthru
      _
    %s29 = sadd.s32 0, 0
    %s30 = smul.u32 16, %s29
    %p31 = scmp.lt.s32.totalorder %s30, 15
    %s32 = scalar_select %p31, %s30, 15
    %s33 = smul.addr %s32, 8
    %s34 = scalar_lea.vmem %s0, %s33
    %s35 = sadd.s32 0, 0
    %s36 = smul.u32 16, %s35
    %p37 = scmp.lt.s32.totalorder %s36, 15
    %s38 = scalar_select %p37, %s36, 15
    %s39 = smul.addr %s38, 8
    %s40 = scalar_lea.vmem %s0, %s39
    %s41 = sadd.s32 0, 0
    %s42 = smul.u32 16, %s41
    %s43 = sadd.s32 0, 0
    %p44 = scmp.eq.s32.totalorder 0, 0
    // Predicated region
    $region18: #{tpu_custom_call.1} parent=1 // pred_check
      %p45 = pneg %p44
    $region19: #{tpu_custom_call.1} parent=1 // pred_check_branch
      %47 = sbr.rel (%p45) target = $region21
    $region20: #{tpu_custom_call.1} parent=1 // pred_region
      %vm48 = vcmask 254976
      %49 = vst.msk [vmem:[#allocation2] sm:$0x3] %vm48, 0.0
    $region21: #{tpu_custom_call.1} parent=1 // pred_fallthru
      _
    %v50 = vld [vmem:[%s40] sm:$0xff]
    %v51 = vld [vmem:[%s40 + $0x8] sm:$0xff]
    %v52 = vld [vmem:[%s40 + $0x10] sm:$0xff]
    %v53 = vld [vmem:[%s40 + $0x18] sm:$0xff]
    %v54 = vld [vmem:[%s40 + $0x20] sm:$0xff]
    %v55 = vld [vmem:[%s40 + $0x28] sm:$0xff]
    %v56 = vld [vmem:[%s40 + $0x30] sm:$0xff]
    %v57 = vld [vmem:[%s40 + $0x38] sm:$0xff]
    %v58 = vld [vmem:[%s40 + $0x40] sm:$0xff]
    %v59 = vld [vmem:[%s40 + $0x48] sm:$0xff]
    %v60 = vld [vmem:[%s40 + $0x50] sm:$0xff]
    %v61 = vld [vmem:[%s40 + $0x58] sm:$0xff]
    %v62 = vld [vmem:[%s40 + $0x60] sm:$0xff]
    %v63 = vld [vmem:[%s40 + $0x68] sm:$0xff]
    %v64 = vld [vmem:[%s40 + $0x70] sm:$0xff]
    %v65 = vld [vmem:[%s40 + $0x78] sm:$0xff]
    %v66 = vld [vmem:[%s40 + $0x80] sm:$0xff]
    %v67 = vld [vmem:[%s40 + $0x88] sm:$0xff]
    %v68 = vld [vmem:[%s40 + $0x90] sm:$0xff]
    %v69 = vld [vmem:[%s40 + $0x98] sm:$0xff]
    %v70 = vld [vmem:[%s40 + $0xa0] sm:$0xff]
    %v71 = vld [vmem:[%s40 + $0xa8] sm:$0xff]
    %v72 = vld [vmem:[%s40 + $0xb0] sm:$0xff]
    %v73 = vld [vmem:[%s40 + $0xb8] sm:$0xff]
    %v74 = vld [vmem:[%s40 + $0xc0] sm:$0xff]
    %v75 = vld [vmem:[%s40 + $0xc8] sm:$0xff]
    %v76 = vld [vmem:[%s40 + $0xd0] sm:$0xff]
    %v77 = vld [vmem:[%s40 + $0xd8] sm:$0xff]
    %v78 = vld [vmem:[%s40 + $0xe0] sm:$0xff]
    %v79 = vld [vmem:[%s40 + $0xe8] sm:$0xff]
    %v80 = vld [vmem:[%s40 + $0xf0] sm:$0xff]
    %v81 = vld [vmem:[%s40 + $0xf8] sm:$0xff]
    %v82 = vld [vmem:[%s1] sm:$0xff]
    %v83 = vld [vmem:[%s1 + $0x8] sm:$0xff]
    %v84 = vld [vmem:[%s1 + $0x10] sm:$0xff]
    %v85 = vld [vmem:[%s1 + $0x18] sm:$0xff]
    %v86 = vld [vmem:[%s2] sm:$0x1]
    %v88 = vperm.slane %v86, 0
    %vm90 = vcmask 261120
    %v92 = vsel %vm90, %v50, 0
    %v95 = vsel %vm90, %v51, 0
    %v98 = vsel %vm90, %v52, 0
    %v101 = vsel %vm90, %v53, 0
    %v104 = vsel %vm90, %v54, 0
    %v107 = vsel %vm90, %v55, 0
    %v110 = vsel %vm90, %v56, 0
    %v113 = vsel %vm90, %v57, 0
    %v116 = vsel %vm90, %v58, 0
    %v119 = vsel %vm90, %v59, 0
    %v122 = vsel %vm90, %v60, 0
    %v125 = vsel %vm90, %v61, 0
    %v128 = vsel %vm90, %v62, 0
    %v131 = vsel %vm90, %v63, 0
    %v134 = vsel %vm90, %v64, 0
    %v137 = vsel %vm90, %v65, 0
    %v140 = vsel %vm90, %v66, 0
    %v143 = vsel %vm90, %v67, 0
    %v146 = vsel %vm90, %v68, 0
    %v149 = vsel %vm90, %v69, 0
    %v152 = vsel %vm90, %v70, 0
    %v155 = vsel %vm90, %v71, 0
    %v158 = vsel %vm90, %v72, 0
    %v161 = vsel %vm90, %v73, 0
    %v164 = vsel %vm90, %v74, 0
    %v167 = vsel %vm90, %v75, 0
    %v170 = vsel %vm90, %v76, 0
    %v173 = vsel %vm90, %v77, 0
    %v176 = vsel %vm90, %v78, 0
    %v179 = vsel %vm90, %v79, 0
    %v182 = vsel %vm90, %v80, 0
    %v185 = vsel %vm90, %v81, 0
    %187 = vmatpush.msra.mxu0 0.0
    %188 = vmatpush.msra.mxu0 0.0
    %189 = vmatpush.msra.mxu0 0.0
    %190 = vmatpush.msra.mxu0 0.0
    %191 = vmatpush.msra.mxu0 0.0
    %192 = vmatpush.msra.mxu0 0.0
    %193 = vmatpush.msra.mxu0 0.0
    %194 = vmatpush.msra.mxu0 0.0
    %195 = vmatpush.msra.mxu0 0.0
    %196 = vmatpush.msra.mxu0 0.0
    %197 = vmatpush.msra.mxu0 0.0
    %198 = vmatpush.msra.mxu0 0.0
    %199 = vmatpush.msra.mxu0 %v85
    %200 = vmatpush.msra.mxu0 %v84
    %201 = vmatpush.msra.mxu0 %v83
    %202 = vmatpush.msra.mxu0 %v82
    %203 = vmatmul.f32.gmra.mxu0 %v92
    %v204 = vpop.f32.mrf.mxu0
    %v205 = vadd.f32 %v88, %v204
    %206 = vmatmul.f32.gmra.mxu0 %v95
    %v207 = vpop.f32.mrf.mxu0
    %v208 = vadd.f32 %v88, %v207
    %209 = vmatmul.f32.gmra.mxu0 %v98
    %v210 = vpop.f32.mrf.mxu0
    %v211 = vadd.f32 %v88, %v210
    %212 = vmatmul.f32.gmra.mxu0 %v101
    %v213 = vpop.f32.mrf.mxu0
    %v214 = vadd.f32 %v88, %v213
    %215 = vmatmul.f32.gmra.mxu0 %v104
    %v216 = vpop.f32.mrf.mxu0
    %v217 = vadd.f32 %v88, %v216
    %218 = vmatmul.f32.gmra.mxu0 %v107
    %v219 = vpop.f32.mrf.mxu0
    %v220 = vadd.f32 %v88, %v219
    %221 = vmatmul.f32.gmra.mxu0 %v110
    %v222 = vpop.f32.mrf.mxu0
    %v223 = vadd.f32 %v88, %v222
    %224 = vmatmul.f32.gmra.mxu0 %v113
    %v225 = vpop.f32.mrf.mxu0
    %v226 = vadd.f32 %v88, %v225
    %227 = vmatmul.f32.gmra.mxu0 %v116
    %v228 = vpop.f32.mrf.mxu0
    %v229 = vadd.f32 %v88, %v228
    %230 = vmatmul.f32.gmra.mxu0 %v119
    %v231 = vpop.f32.mrf.mxu0
    %v232 = vadd.f32 %v88, %v231
    %233 = vmatmul.f32.gmra.mxu0 %v122
    %v234 = vpop.f32.mrf.mxu0
    %v235 = vadd.f32 %v88, %v234
    %236 = vmatmul.f32.gmra.mxu0 %v125
    %v237 = vpop.f32.mrf.mxu0
    %v238 = vadd.f32 %v88, %v237
    %239 = vmatmul.f32.gmra.mxu0 %v128
    %v240 = vpop.f32.mrf.mxu0
    %v241 = vadd.f32 %v88, %v240
    %242 = vmatmul.f32.gmra.mxu0 %v131
    %v243 = vpop.f32.mrf.mxu0
    %v244 = vadd.f32 %v88, %v243
    %245 = vmatmul.f32.gmra.mxu0 %v134
    %v246 = vpop.f32.mrf.mxu0
    %v247 = vadd.f32 %v88, %v246
    %248 = vmatmul.f32.gmra.mxu0 %v137
    %v249 = vpop.f32.mrf.mxu0
    %v250 = vadd.f32 %v88, %v249
    %251 = vmatmul.f32.gmra.mxu0 %v140
    %v252 = vpop.f32.mrf.mxu0
    %v253 = vadd.f32 %v88, %v252
    %254 = vmatmul.f32.gmra.mxu0 %v143
    %v255 = vpop.f32.mrf.mxu0
    %v256 = vadd.f32 %v88, %v255
    %257 = vmatmul.f32.gmra.mxu0 %v146
    %v258 = vpop.f32.mrf.mxu0
    %v259 = vadd.f32 %v88, %v258
    %260 = vmatmul.f32.gmra.mxu0 %v149
    %v261 = vpop.f32.mrf.mxu0
    %v262 = vadd.f32 %v88, %v261
    %263 = vmatmul.f32.gmra.mxu0 %v152
    %v264 = vpop.f32.mrf.mxu0
    %v265 = vadd.f32 %v88, %v264
    %266 = vmatmul.f32.gmra.mxu0 %v155
    %v267 = vpop.f32.mrf.mxu0
    %v268 = vadd.f32 %v88, %v267
    %269 = vmatmul.f32.gmra.mxu0 %v158
    %v270 = vpop.f32.mrf.mxu0
    %v271 = vadd.f32 %v88, %v270
    %272 = vmatmul.f32.gmra.mxu0 %v161
    %v273 = vpop.f32.mrf.mxu0
    %v274 = vadd.f32 %v88, %v273
    %275 = vmatmul.f32.gmra.mxu0 %v164
    %v276 = vpop.f32.mrf.mxu0
    %v277 = vadd.f32 %v88, %v276
    %278 = vmatmul.f32.gmra.mxu0 %v167
    %v279 = vpop.f32.mrf.mxu0
    %v280 = vadd.f32 %v88, %v279
    %281 = vmatmul.f32.gmra.mxu0 %v170
    %v282 = vpop.f32.mrf.mxu0
    %v283 = vadd.f32 %v88, %v282
    %284 = vmatmul.f32.gmra.mxu0 %v173
    %v285 = vpop.f32.mrf.mxu0
    %v286 = vadd.f32 %v88, %v285
    %287 = vmatmul.f32.gmra.mxu0 %v176
    %v288 = vpop.f32.mrf.mxu0
    %v289 = vadd.f32 %v88, %v288
    %290 = vmatmul.f32.gmra.mxu0 %v179
    %v291 = vpop.f32.mrf.mxu0
    %v292 = vadd.f32 %v88, %v291
    %293 = vmatmul.f32.gmra.mxu0 %v182
    %v294 = vpop.f32.mrf.mxu0
    %v295 = vadd.f32 %v88, %v294
    %296 = vmatmul.f32.gmra.mxu0 %v185
    %v297 = vpop.f32.mrf.mxu0
    %v298 = vadd.f32 %v88, %v297
    %299 = vdwg.mxu0
    %v300 = vmax.f32 %v205, 0.0
    %v301 = vmax.f32 %v208, 0.0
    %v302 = vmax.f32 %v211, 0.0
    %v303 = vmax.f32 %v214, 0.0
    %v304 = vmax.f32 %v217, 0.0
    %v305 = vmax.f32 %v220, 0.0
    %v306 = vmax.f32 %v223, 0.0
    %v307 = vmax.f32 %v226, 0.0
    %v308 = vmax.f32 %v229, 0.0
    %v309 = vmax.f32 %v232, 0.0
    %v310 = vmax.f32 %v235, 0.0
    %v311 = vmax.f32 %v238, 0.0
    %v312 = vmax.f32 %v241, 0.0
    %v313 = vmax.f32 %v244, 0.0
    %v314 = vmax.f32 %v247, 0.0
    %v315 = vmax.f32 %v250, 0.0
    %v316 = vmax.f32 %v253, 0.0
    %v317 = vmax.f32 %v256, 0.0
    %v318 = vmax.f32 %v259, 0.0
    %v319 = vmax.f32 %v262, 0.0
    %v320 = vmax.f32 %v265, 0.0
    %v321 = vmax.f32 %v268, 0.0
    %v322 = vmax.f32 %v271, 0.0
    %v323 = vmax.f32 %v274, 0.0
    %v324 = vmax.f32 %v277, 0.0
    %v325 = vmax.f32 %v280, 0.0
    %v326 = vmax.f32 %v283, 0.0
    %v327 = vmax.f32 %v286, 0.0
    %v328 = vmax.f32 %v289, 0.0
    %v329 = vmax.f32 %v292, 0.0
    %v330 = vmax.f32 %v295, 0.0
    %v331 = vmax.f32 %v298, 0.0
    %v332 = vmin.f32 %v205, 0.0
    %v333 = vmin.f32 %v208, 0.0
    %v334 = vmin.f32 %v211, 0.0
    %v335 = vmin.f32 %v214, 0.0
    %v336 = vmin.f32 %v217, 0.0
    %v337 = vmin.f32 %v220, 0.0
    %v338 = vmin.f32 %v223, 0.0
    %v339 = vmin.f32 %v226, 0.0
    %v340 = vmin.f32 %v229, 0.0
    %v341 = vmin.f32 %v232, 0.0
    %v342 = vmin.f32 %v235, 0.0
    %v343 = vmin.f32 %v238, 0.0
    %v344 = vmin.f32 %v241, 0.0
    %v345 = vmin.f32 %v244, 0.0
    %v346 = vmin.f32 %v247, 0.0
    %v347 = vmin.f32 %v250, 0.0
    %v348 = vmin.f32 %v253, 0.0
    %v349 = vmin.f32 %v256, 0.0
    %v350 = vmin.f32 %v259, 0.0
    %v351 = vmin.f32 %v262, 0.0
    %v352 = vmin.f32 %v265, 0.0
    %v353 = vmin.f32 %v268, 0.0
    %v354 = vmin.f32 %v271, 0.0
    %v355 = vmin.f32 %v274, 0.0
    %v356 = vmin.f32 %v277, 0.0
    %v357 = vmin.f32 %v280, 0.0
    %v358 = vmin.f32 %v283, 0.0
    %v359 = vmin.f32 %v286, 0.0
    %v360 = vmin.f32 %v289, 0.0
    %v361 = vmin.f32 %v292, 0.0
    %v362 = vmin.f32 %v295, 0.0
    %v363 = vmin.f32 %v298, 0.0
    %v364 = vmul.f32 %v332, 1.442695
    %v365 = vpow.pop %v364
    %v366 = vmul.f32 %v333, 1.442695
    %v367 = vpow.pop %v366
    %v368 = vmul.f32 %v334, 1.442695
    %v369 = vpow.pop %v368
    %v370 = vmul.f32 %v335, 1.442695
    %v371 = vpow.pop %v370
    %v372 = vmul.f32 %v336, 1.442695
    %v373 = vpow.pop %v372
    %v374 = vmul.f32 %v337, 1.442695
    %v375 = vpow.pop %v374
    %v376 = vmul.f32 %v338, 1.442695
    %v377 = vpow.pop %v376
    %v378 = vmul.f32 %v339, 1.442695
    %v379 = vpow.pop %v378
    %v380 = vmul.f32 %v340, 1.442695
    %v381 = vpow.pop %v380
    %v382 = vmul.f32 %v341, 1.442695
    %v383 = vpow.pop %v382
    %v384 = vmul.f32 %v342, 1.442695
    %v385 = vpow.pop %v384
    %v386 = vmul.f32 %v343, 1.442695
    %v387 = vpow.pop %v386
    %v388 = vmul.f32 %v344, 1.442695
    %v389 = vpow.pop %v388
    %v390 = vmul.f32 %v345, 1.442695
    %v391 = vpow.pop %v390
    %v392 = vmul.f32 %v346, 1.442695
    %v393 = vpow.pop %v392
    %v394 = vmul.f32 %v347, 1.442695
    %v395 = vpow.pop %v394
    %v396 = vmul.f32 %v348, 1.442695
    %v397 = vpow.pop %v396
    %v398 = vmul.f32 %v349, 1.442695
    %v399 = vpow.pop %v398
    %v400 = vmul.f32 %v350, 1.442695
    %v401 = vpow.pop %v400
    %v402 = vmul.f32 %v351, 1.442695
    %v403 = vpow.pop %v402
    %v404 = vmul.f32 %v352, 1.442695
    %v405 = vpow.pop %v404
    %v406 = vmul.f32 %v353, 1.442695
    %v407 = vpow.pop %v406
    %v408 = vmul.f32 %v354, 1.442695
    %v409 = vpow.pop %v408
    %v410 = vmul.f32 %v355, 1.442695
    %v411 = vpow.pop %v410
    %v412 = vmul.f32 %v356, 1.442695
    %v413 = vpow.pop %v412
    %v414 = vmul.f32 %v357, 1.442695
    %v415 = vpow.pop %v414
    %v416 = vmul.f32 %v358, 1.442695
    %v417 = vpow.pop %v416
    %v418 = vmul.f32 %v359, 1.442695
    %v419 = vpow.pop %v418
    %v420 = vmul.f32 %v360, 1.442695
    %v421 = vpow.pop %v420
    %v422 = vmul.f32 %v361, 1.442695
    %v423 = vpow.pop %v422
    %v424 = vmul.f32 %v362, 1.442695
    %v425 = vpow.pop %v424
    %v426 = vmul.f32 %v363, 1.442695
    %v427 = vpow.pop %v426
    %v428 = vsub.f32 %v365, 1.0
    %v429 = vsub.f32 %v367, 1.0
    %v430 = vsub.f32 %v369, 1.0
    %v431 = vsub.f32 %v371, 1.0
    %v432 = vsub.f32 %v373, 1.0
    %v433 = vsub.f32 %v375, 1.0
    %v434 = vsub.f32 %v377, 1.0
    %v435 = vsub.f32 %v379, 1.0
    %v436 = vsub.f32 %v381, 1.0
    %v437 = vsub.f32 %v383, 1.0
    %v438 = vsub.f32 %v385, 1.0
    %v439 = vsub.f32 %v387, 1.0
    %v440 = vsub.f32 %v389, 1.0
    %v441 = vsub.f32 %v391, 1.0
    %v442 = vsub.f32 %v393, 1.0
    %v443 = vsub.f32 %v395, 1.0
    %v444 = vsub.f32 %v397, 1.0
    %v445 = vsub.f32 %v399, 1.0
    %v446 = vsub.f32 %v401, 1.0
    %v447 = vsub.f32 %v403, 1.0
    %v448 = vsub.f32 %v405, 1.0
    %v449 = vsub.f32 %v407, 1.0
    %v450 = vsub.f32 %v409, 1.0
    %v451 = vsub.f32 %v411, 1.0
    %v452 = vsub.f32 %v413, 1.0
    %v453 = vsub.f32 %v415, 1.0
    %v454 = vsub.f32 %v417, 1.0
    %v455 = vsub.f32 %v419, 1.0
    %v456 = vsub.f32 %v421, 1.0
    %v457 = vsub.f32 %v423, 1.0
    %v458 = vsub.f32 %v425, 1.0
    %v459 = vsub.f32 %v427, 1.0
    %v460 = vmul.f32 %v428, 1.6732632
    %v461 = vmul.f32 %v429, 1.6732632
    %v462 = vmul.f32 %v430, 1.6732632
    %v463 = vmul.f32 %v431, 1.6732632
    %v464 = vmul.f32 %v432, 1.6732632
    %v465 = vmul.f32 %v433, 1.6732632
    %v466 = vmul.f32 %v434, 1.6732632
    %v467 = vmul.f32 %v435, 1.6732632
    %v468 = vmul.f32 %v436, 1.6732632
    %v469 = vmul.f32 %v437, 1.6732632
    %v470 = vmul.f32 %v438, 1.6732632
    %v471 = vmul.f32 %v439, 1.6732632
    %v472 = vmul.f32 %v440, 1.6732632
    %v473 = vmul.f32 %v441, 1.6732632
    %v474 = vmul.f32 %v442, 1.6732632
    %v475 = vmul.f32 %v443, 1.6732632
    %v476 = vmul.f32 %v444, 1.6732632
    %v477 = vmul.f32 %v445, 1.6732632
    %v478 = vmul.f32 %v446, 1.6732632
    %v479 = vmul.f32 %v447, 1.6732632
    %v480 = vmul.f32 %v448, 1.6732632
    %v481 = vmul.f32 %v449, 1.6732632
    %v482 = vmul.f32 %v450, 1.6732632
    %v483 = vmul.f32 %v451, 1.6732632
    %v484 = vmul.f32 %v452, 1.6732632
    %v485 = vmul.f32 %v453, 1.6732632
    %v486 = vmul.f32 %v454, 1.6732632
    %v487 = vmul.f32 %v455, 1.6732632
    %v488 = vmul.f32 %v456, 1.6732632
    %v489 = vmul.f32 %v457, 1.6732632
    %v490 = vmul.f32 %v458, 1.6732632
    %v491 = vmul.f32 %v459, 1.6732632
    %v492 = vadd.f32 %v300, %v460
    %v493 = vadd.f32 %v301, %v461
    %v494 = vadd.f32 %v302, %v462
    %v495 = vadd.f32 %v303, %v463
    %v496 = vadd.f32 %v304, %v464
    %v497 = vadd.f32 %v305, %v465
    %v498 = vadd.f32 %v306, %v466
    %v499 = vadd.f32 %v307, %v467
    %v500 = vadd.f32 %v308, %v468
    %v501 = vadd.f32 %v309, %v469
    %v502 = vadd.f32 %v310, %v470
    %v503 = vadd.f32 %v311, %v471
    %v504 = vadd.f32 %v312, %v472
    %v505 = vadd.f32 %v313, %v473
    %v506 = vadd.f32 %v314, %v474
    %v507 = vadd.f32 %v315, %v475
    %v508 = vadd.f32 %v316, %v476
    %v509 = vadd.f32 %v317, %v477
    %v510 = vadd.f32 %v318, %v478
    %v511 = vadd.f32 %v319, %v479
    %v512 = vadd.f32 %v320, %v480
    %v513 = vadd.f32 %v321, %v481
    %v514 = vadd.f32 %v322, %v482
    %v515 = vadd.f32 %v323, %v483
    %v516 = vadd.f32 %v324, %v484
    %v517 = vadd.f32 %v325, %v485
    %v518 = vadd.f32 %v326, %v486
    %v519 = vadd.f32 %v327, %v487
    %v520 = vadd.f32 %v328, %v488
    %v521 = vadd.f32 %v329, %v489
    %v522 = vadd.f32 %v330, %v490
    %v523 = vadd.f32 %v331, %v491
    %v524 = vmul.f32 %v492, 1.050701
    %v525 = vmul.f32 %v493, 1.050701
    %v526 = vmul.f32 %v494, 1.050701
    %v527 = vmul.f32 %v495, 1.050701
    %v528 = vmul.f32 %v496, 1.050701
    %v529 = vmul.f32 %v497, 1.050701
    %v530 = vmul.f32 %v498, 1.050701
    %v531 = vmul.f32 %v499, 1.050701
    %v532 = vmul.f32 %v500, 1.050701
    %v533 = vmul.f32 %v501, 1.050701
    %v534 = vmul.f32 %v502, 1.050701
    %v535 = vmul.f32 %v503, 1.050701
    %v536 = vmul.f32 %v504, 1.050701
    %v537 = vmul.f32 %v505, 1.050701
    %v538 = vmul.f32 %v506, 1.050701
    %v539 = vmul.f32 %v507, 1.050701
    %v540 = vmul.f32 %v508, 1.050701
    %v541 = vmul.f32 %v509, 1.050701
    %v542 = vmul.f32 %v510, 1.050701
    %v543 = vmul.f32 %v511, 1.050701
    %v544 = vmul.f32 %v512, 1.050701
    %v545 = vmul.f32 %v513, 1.050701
    %v546 = vmul.f32 %v514, 1.050701
    %v547 = vmul.f32 %v515, 1.050701
    %v548 = vmul.f32 %v516, 1.050701
    %v549 = vmul.f32 %v517, 1.050701
    %v550 = vmul.f32 %v518, 1.050701
    %v551 = vmul.f32 %v519, 1.050701
    %v552 = vmul.f32 %v520, 1.050701
    %v553 = vmul.f32 %v521, 1.050701
    %v554 = vmul.f32 %v522, 1.050701
    %v555 = vmul.f32 %v523, 1.050701
    %v556 = vld [vmem:[%s3] sm:$0x1]
    %v558 = vperm.slane %v556, 0
    %v560 = vmul.f32 %v524, %v558
    %v561 = vmul.f32 %v525, %v558
    %v562 = vmul.f32 %v526, %v558
    %v563 = vmul.f32 %v527, %v558
    %v564 = vmul.f32 %v528, %v558
    %v565 = vmul.f32 %v529, %v558
    %v566 = vmul.f32 %v530, %v558
    %v567 = vmul.f32 %v531, %v558
    %v568 = vmul.f32 %v532, %v558
    %v569 = vmul.f32 %v533, %v558
    %v570 = vmul.f32 %v534, %v558
    %v571 = vmul.f32 %v535, %v558
    %v572 = vmul.f32 %v536, %v558
    %v573 = vmul.f32 %v537, %v558
    %v574 = vmul.f32 %v538, %v558
    %v575 = vmul.f32 %v539, %v558
    %v576 = vmul.f32 %v540, %v558
    %v577 = vmul.f32 %v541, %v558
    %v578 = vmul.f32 %v542, %v558
    %v579 = vmul.f32 %v543, %v558
    %v580 = vmul.f32 %v544, %v558
    %v581 = vmul.f32 %v545, %v558
    %v582 = vmul.f32 %v546, %v558
    %v583 = vmul.f32 %v547, %v558
    %v584 = vmul.f32 %v548, %v558
    %v585 = vmul.f32 %v549, %v558
    %v586 = vmul.f32 %v550, %v558
    %v587 = vmul.f32 %v551, %v558
    %v588 = vmul.f32 %v552, %v558
    %v589 = vmul.f32 %v553, %v558
    %v590 = vmul.f32 %v554, %v558
    %v591 = vmul.f32 %v555, %v558
    %v592 = vsel %vm90, %v560, 0.0
    %593 = vadd.xlane.f32.xlu0 %v592
    %v594 = vpop.xlane.xlu0 %593
    %v595 = vsel %vm90, %v561, 0.0
    %596 = vadd.xlane.f32.xlu0 %v595
    %v597 = vpop.xlane.xlu0 %596
    %v598 = vsel %vm90, %v562, 0.0
    %599 = vadd.xlane.f32.xlu0 %v598
    %v600 = vpop.xlane.xlu0 %599
    %v601 = vsel %vm90, %v563, 0.0
    %602 = vadd.xlane.f32.xlu0 %v601
    %v603 = vpop.xlane.xlu0 %602
    %v604 = vsel %vm90, %v564, 0.0
    %605 = vadd.xlane.f32.xlu0 %v604
    %v606 = vpop.xlane.xlu0 %605
    %v607 = vsel %vm90, %v565, 0.0
    %608 = vadd.xlane.f32.xlu0 %v607
    %v609 = vpop.xlane.xlu0 %608
    %v610 = vsel %vm90, %v566, 0.0
    %611 = vadd.xlane.f32.xlu0 %v610
    %v612 = vpop.xlane.xlu0 %611
    %v613 = vsel %vm90, %v567, 0.0
    %614 = vadd.xlane.f32.xlu0 %v613
    %v615 = vpop.xlane.xlu0 %614
    %v616 = vsel %vm90, %v568, 0.0
    %617 = vadd.xlane.f32.xlu0 %v616
    %v618 = vpop.xlane.xlu0 %617
    %v619 = vsel %vm90, %v569, 0.0
    %620 = vadd.xlane.f32.xlu0 %v619
    %v621 = vpop.xlane.xlu0 %620
    %v622 = vsel %vm90, %v570, 0.0
    %623 = vadd.xlane.f32.xlu0 %v622
    %v624 = vpop.xlane.xlu0 %623
    %v625 = vsel %vm90, %v571, 0.0
    %626 = vadd.xlane.f32.xlu0 %v625
    %v627 = vpop.xlane.xlu0 %626
    %v628 = vsel %vm90, %v572, 0.0
    %629 = vadd.xlane.f32.xlu0 %v628
    %v630 = vpop.xlane.xlu0 %629
    %v631 = vsel %vm90, %v573, 0.0
    %632 = vadd.xlane.f32.xlu0 %v631
    %v633 = vpop.xlane.xlu0 %632
    %v634 = vsel %vm90, %v574, 0.0
    %635 = vadd.xlane.f32.xlu0 %v634
    %v636 = vpop.xlane.xlu0 %635
    %v637 = vsel %vm90, %v575, 0.0
    %638 = vadd.xlane.f32.xlu0 %v637
    %v639 = vpop.xlane.xlu0 %638
    %v640 = vsel %vm90, %v576, 0.0
    %641 = vadd.xlane.f32.xlu0 %v640
    %v642 = vpop.xlane.xlu0 %641
    %v643 = vsel %vm90, %v577, 0.0
    %644 = vadd.xlane.f32.xlu0 %v643
    %v645 = vpop.xlane.xlu0 %644
    %v646 = vsel %vm90, %v578, 0.0
    %647 = vadd.xlane.f32.xlu0 %v646
    %v648 = vpop.xlane.xlu0 %647
    %v649 = vsel %vm90, %v579, 0.0
    %650 = vadd.xlane.f32.xlu0 %v649
    %v651 = vpop.xlane.xlu0 %650
    %v652 = vsel %vm90, %v580, 0.0
    %653 = vadd.xlane.f32.xlu0 %v652
    %v654 = vpop.xlane.xlu0 %653
    %v655 = vsel %vm90, %v581, 0.0
    %656 = vadd.xlane.f32.xlu0 %v655
    %v657 = vpop.xlane.xlu0 %656
    %v658 = vsel %vm90, %v582, 0.0
    %659 = vadd.xlane.f32.xlu0 %v658
    %v660 = vpop.xlane.xlu0 %659
    %v661 = vsel %vm90, %v583, 0.0
    %662 = vadd.xlane.f32.xlu0 %v661
    %v663 = vpop.xlane.xlu0 %662
    %v664 = vsel %vm90, %v584, 0.0
    %665 = vadd.xlane.f32.xlu0 %v664
    %v666 = vpop.xlane.xlu0 %665
    %v667 = vsel %vm90, %v585, 0.0
    %668 = vadd.xlane.f32.xlu0 %v667
    %v669 = vpop.xlane.xlu0 %668
    %v670 = vsel %vm90, %v586, 0.0
    %671 = vadd.xlane.f32.xlu0 %v670
    %v672 = vpop.xlane.xlu0 %671
    %v673 = vsel %vm90, %v587, 0.0
    %674 = vadd.xlane.f32.xlu0 %v673
    %v675 = vpop.xlane.xlu0 %674
    %v676 = vsel %vm90, %v588, 0.0
    %677 = vadd.xlane.f32.xlu0 %v676
    %v678 = vpop.xlane.xlu0 %677
    %v679 = vsel %vm90, %v589, 0.0
    %680 = vadd.xlane.f32.xlu0 %v679
    %v681 = vpop.xlane.xlu0 %680
    %v682 = vsel %vm90, %v590, 0.0
    %683 = vadd.xlane.f32.xlu0 %v682
    %v684 = vpop.xlane.xlu0 %683
    %v685 = vsel %vm90, %v591, 0.0
    %686 = vadd.xlane.f32.xlu0 %v685
    %v687 = vpop.xlane.xlu0 %686
    %v688 = vmax.f32 %v594, %v642
    %v689 = vmax.f32 %v597, %v645
    %v690 = vmax.f32 %v600, %v648
    %v691 = vmax.f32 %v603, %v651
    %v692 = vmax.f32 %v606, %v654
    %v693 = vmax.f32 %v609, %v657
    %v694 = vmax.f32 %v612, %v660
    %v695 = vmax.f32 %v615, %v663
    %v696 = vmax.f32 %v618, %v666
    %v697 = vmax.f32 %v621, %v669
    %v698 = vmax.f32 %v624, %v672
    %v699 = vmax.f32 %v627, %v675
    %v700 = vmax.f32 %v630, %v678
    %v701 = vmax.f32 %v633, %v681
    %v702 = vmax.f32 %v636, %v684
    %v703 = vmax.f32 %v639, %v687
    %v704 = vsub.f32 %v594, %v688
    %v705 = vsub.f32 %v597, %v689
    %v706 = vsub.f32 %v600, %v690
    %v707 = vsub.f32 %v603, %v691
    %v708 = vsub.f32 %v606, %v692
    %v709 = vsub.f32 %v609, %v693
    %v710 = vsub.f32 %v612, %v694
    %v711 = vsub.f32 %v615, %v695
    %v712 = vsub.f32 %v618, %v696
    %v713 = vsub.f32 %v621, %v697
    %v714 = vsub.f32 %v624, %v698
    %v715 = vsub.f32 %v627, %v699
    %v716 = vsub.f32 %v630, %v700
    %v717 = vsub.f32 %v633, %v701
    %v718 = vsub.f32 %v636, %v702
    %v719 = vsub.f32 %v639, %v703
    %v720 = vsub.f32 %v642, %v688
    %v721 = vsub.f32 %v645, %v689
    %v722 = vsub.f32 %v648, %v690
    %v723 = vsub.f32 %v651, %v691
    %v724 = vsub.f32 %v654, %v692
    %v725 = vsub.f32 %v657, %v693
    %v726 = vsub.f32 %v660, %v694
    %v727 = vsub.f32 %v663, %v695
    %v728 = vsub.f32 %v666, %v696
    %v729 = vsub.f32 %v669, %v697
    %v730 = vsub.f32 %v672, %v698
    %v731 = vsub.f32 %v675, %v699
    %v732 = vsub.f32 %v678, %v700
    %v733 = vsub.f32 %v681, %v701
    %v734 = vsub.f32 %v684, %v702
    %v735 = vsub.f32 %v687, %v703
    %v736 = vmul.f32 %v704, 1.442695
    %v737 = vpow.pop %v736
    %v738 = vmul.f32 %v705, 1.442695
    %v739 = vpow.pop %v738
    %v740 = vmul.f32 %v706, 1.442695
    %v741 = vpow.pop %v740
    %v742 = vmul.f32 %v707, 1.442695
    %v743 = vpow.pop %v742
    %v744 = vmul.f32 %v708, 1.442695
    %v745 = vpow.pop %v744
    %v746 = vmul.f32 %v709, 1.442695
    %v747 = vpow.pop %v746
    %v748 = vmul.f32 %v710, 1.442695
    %v749 = vpow.pop %v748
    %v750 = vmul.f32 %v711, 1.442695
    %v751 = vpow.pop %v750
    %v752 = vmul.f32 %v712, 1.442695
    %v753 = vpow.pop %v752
    %v754 = vmul.f32 %v713, 1.442695
    %v755 = vpow.pop %v754
    %v756 = vmul.f32 %v714, 1.442695
    %v757 = vpow.pop %v756
    %v758 = vmul.f32 %v715, 1.442695
    %v759 = vpow.pop %v758
    %v760 = vmul.f32 %v716, 1.442695
    %v761 = vpow.pop %v760
    %v762 = vmul.f32 %v717, 1.442695
    %v763 = vpow.pop %v762
    %v764 = vmul.f32 %v718, 1.442695
    %v765 = vpow.pop %v764
    %v766 = vmul.f32 %v719, 1.442695
    %v767 = vpow.pop %v766
    %v768 = vmul.f32 %v720, 1.442695
    %v769 = vpow.pop %v768
    %v770 = vmul.f32 %v721, 1.442695
    %v771 = vpow.pop %v770
    %v772 = vmul.f32 %v722, 1.442695
    %v773 = vpow.pop %v772
    %v774 = vmul.f32 %v723, 1.442695
    %v775 = vpow.pop %v774
    %v776 = vmul.f32 %v724, 1.442695
    %v777 = vpow.pop %v776
    %v778 = vmul.f32 %v725, 1.442695
    %v779 = vpow.pop %v778
    %v780 = vmul.f32 %v726, 1.442695
    %v781 = vpow.pop %v780
    %v782 = vmul.f32 %v727, 1.442695
    %v783 = vpow.pop %v782
    %v784 = vmul.f32 %v728, 1.442695
    %v785 = vpow.pop %v784
    %v786 = vmul.f32 %v729, 1.442695
    %v787 = vpow.pop %v786
    %v788 = vmul.f32 %v730, 1.442695
    %v789 = vpow.pop %v788
    %v790 = vmul.f32 %v731, 1.442695
    %v791 = vpow.pop %v790
    %v792 = vmul.f32 %v732, 1.442695
    %v793 = vpow.pop %v792
    %v794 = vmul.f32 %v733, 1.442695
    %v795 = vpow.pop %v794
    %v796 = vmul.f32 %v734, 1.442695
    %v797 = vpow.pop %v796
    %v798 = vmul.f32 %v735, 1.442695
    %v799 = vpow.pop %v798
    %v800 = vadd.f32 %v737, %v769
    %v801 = vadd.f32 %v739, %v771
    %v802 = vadd.f32 %v741, %v773
    %v803 = vadd.f32 %v743, %v775
    %v804 = vadd.f32 %v745, %v777
    %v805 = vadd.f32 %v747, %v779
    %v806 = vadd.f32 %v749, %v781
    %v807 = vadd.f32 %v751, %v783
    %v808 = vadd.f32 %v753, %v785
    %v809 = vadd.f32 %v755, %v787
    %v810 = vadd.f32 %v757, %v789
    %v811 = vadd.f32 %v759, %v791
    %v812 = vadd.f32 %v761, %v793
    %v813 = vadd.f32 %v763, %v795
    %v814 = vadd.f32 %v765, %v797
    %v815 = vadd.f32 %v767, %v799
    %v816 = vrcp.pop %v800
    %v817 = vmul.f32 %v800, %v816
    %v818 = vsub.f32 1.0, %v817
    %v819 = vmul.f32 %v816, %v818
    %v820 = vadd.f32 %v816, %v819
    %vm821 = vweird.f32 %v800
    %vm822 = vweird.f32 %v816
    %vm823 = vmor %vm821, %vm822
    %v824 = vsel %vm823, %v816, %v820
    %v825 = vand.u32 2147483647, %v800
    %vm826 = vcmp.eq.f32.partialorder %v825, 8.507059e+37
    %v827 = vand.u32 %v800, 2147483648
    %v828 = vor.u32 1.1754944e-38, %v827
    %v829 = vsel %vm826, %v828, %v824
    %v830 = vmul.f32 %v737, %v829
    %v831 = vrcp.pop %v801
    %v832 = vmul.f32 %v801, %v831
    %v833 = vsub.f32 1.0, %v832
    %v834 = vmul.f32 %v831, %v833
    %v835 = vadd.f32 %v831, %v834
    %vm836 = vweird.f32 %v801
    %vm837 = vweird.f32 %v831
    %vm838 = vmor %vm836, %vm837
    %v839 = vsel %vm838, %v831, %v835
    %v840 = vand.u32 2147483647, %v801
    %vm841 = vcmp.eq.f32.partialorder %v840, 8.507059e+37
    %v842 = vand.u32 %v801, 2147483648
    %v843 = vor.u32 1.1754944e-38, %v842
    %v844 = vsel %vm841, %v843, %v839
    %v845 = vmul.f32 %v739, %v844
    %v846 = vrcp.pop %v802
    %v847 = vmul.f32 %v802, %v846
    %v848 = vsub.f32 1.0, %v847
    %v849 = vmul.f32 %v846, %v848
    %v850 = vadd.f32 %v846, %v849
    %vm851 = vweird.f32 %v802
    %vm852 = vweird.f32 %v846
    %vm853 = vmor %vm851, %vm852
    %v854 = vsel %vm853, %v846, %v850
    %v855 = vand.u32 2147483647, %v802
    %vm856 = vcmp.eq.f32.partialorder %v855, 8.507059e+37
    %v857 = vand.u32 %v802, 2147483648
    %v858 = vor.u32 1.1754944e-38, %v857
    %v859 = vsel %vm856, %v858, %v854
    %v860 = vmul.f32 %v741, %v859
    %v861 = vrcp.pop %v803
    %v862 = vmul.f32 %v803, %v861
    %v863 = vsub.f32 1.0, %v862
    %v864 = vmul.f32 %v861, %v863
    %v865 = vadd.f32 %v861, %v864
    %vm866 = vweird.f32 %v803
    %vm867 = vweird.f32 %v861
    %vm868 = vmor %vm866, %vm867
    %v869 = vsel %vm868, %v861, %v865
    %v870 = vand.u32 2147483647, %v803
    %vm871 = vcmp.eq.f32.partialorder %v870, 8.507059e+37
    %v872 = vand.u32 %v803, 2147483648
    %v873 = vor.u32 1.1754944e-38, %v872
    %v874 = vsel %vm871, %v873, %v869
    %v875 = vmul.f32 %v743, %v874
    %v876 = vrcp.pop %v804
    %v877 = vmul.f32 %v804, %v876
    %v878 = vsub.f32 1.0, %v877
    %v879 = vmul.f32 %v876, %v878
    %v880 = vadd.f32 %v876, %v879
    %vm881 = vweird.f32 %v804
    %vm882 = vweird.f32 %v876
    %vm883 = vmor %vm881, %vm882
    %v884 = vsel %vm883, %v876, %v880
    %v885 = vand.u32 2147483647, %v804
    %vm886 = vcmp.eq.f32.partialorder %v885, 8.507059e+37
    %v887 = vand.u32 %v804, 2147483648
    %v888 = vor.u32 1.1754944e-38, %v887
    %v889 = vsel %vm886, %v888, %v884
    %v890 = vmul.f32 %v745, %v889
    %v891 = vrcp.pop %v805
    %v892 = vmul.f32 %v805, %v891
    %v893 = vsub.f32 1.0, %v892
    %v894 = vmul.f32 %v891, %v893
    %v895 = vadd.f32 %v891, %v894
    %vm896 = vweird.f32 %v805
    %vm897 = vweird.f32 %v891
    %vm898 = vmor %vm896, %vm897
    %v899 = vsel %vm898, %v891, %v895
    %v900 = vand.u32 2147483647, %v805
    %vm901 = vcmp.eq.f32.partialorder %v900, 8.507059e+37
    %v902 = vand.u32 %v805, 2147483648
    %v903 = vor.u32 1.1754944e-38, %v902
    %v904 = vsel %vm901, %v903, %v899
    %v905 = vmul.f32 %v747, %v904
    %v906 = vrcp.pop %v806
    %v907 = vmul.f32 %v806, %v906
    %v908 = vsub.f32 1.0, %v907
    %v909 = vmul.f32 %v906, %v908
    %v910 = vadd.f32 %v906, %v909
    %vm911 = vweird.f32 %v806
    %vm912 = vweird.f32 %v906
    %vm913 = vmor %vm911, %vm912
    %v914 = vsel %vm913, %v906, %v910
    %v915 = vand.u32 2147483647, %v806
    %vm916 = vcmp.eq.f32.partialorder %v915, 8.507059e+37
    %v917 = vand.u32 %v806, 2147483648
    %v918 = vor.u32 1.1754944e-38, %v917
    %v919 = vsel %vm916, %v918, %v914
    %v920 = vmul.f32 %v749, %v919
    %v921 = vrcp.pop %v807
    %v922 = vmul.f32 %v807, %v921
    %v923 = vsub.f32 1.0, %v922
    %v924 = vmul.f32 %v921, %v923
    %v925 = vadd.f32 %v921, %v924
    %vm926 = vweird.f32 %v807
    %vm927 = vweird.f32 %v921
    %vm928 = vmor %vm926, %vm927
    %v929 = vsel %vm928, %v921, %v925
    %v930 = vand.u32 2147483647, %v807
    %vm931 = vcmp.eq.f32.partialorder %v930, 8.507059e+37
    %v932 = vand.u32 %v807, 2147483648
    %v933 = vor.u32 1.1754944e-38, %v932
    %v934 = vsel %vm931, %v933, %v929
    %v935 = vmul.f32 %v751, %v934
    %v936 = vrcp.pop %v808
    %v937 = vmul.f32 %v808, %v936
    %v938 = vsub.f32 1.0, %v937
    %v939 = vmul.f32 %v936, %v938
    %v940 = vadd.f32 %v936, %v939
    %vm941 = vweird.f32 %v808
    %vm942 = vweird.f32 %v936
    %vm943 = vmor %vm941, %vm942
    %v944 = vsel %vm943, %v936, %v940
    %v945 = vand.u32 2147483647, %v808
    %vm946 = vcmp.eq.f32.partialorder %v945, 8.507059e+37
    %v947 = vand.u32 %v808, 2147483648
    %v948 = vor.u32 1.1754944e-38, %v947
    %v949 = vsel %vm946, %v948, %v944
    %v950 = vmul.f32 %v753, %v949
    %v951 = vrcp.pop %v809
    %v952 = vmul.f32 %v809, %v951
    %v953 = vsub.f32 1.0, %v952
    %v954 = vmul.f32 %v951, %v953
    %v955 = vadd.f32 %v951, %v954
    %vm956 = vweird.f32 %v809
    %vm957 = vweird.f32 %v951
    %vm958 = vmor %vm956, %vm957
    %v959 = vsel %vm958, %v951, %v955
    %v960 = vand.u32 2147483647, %v809
    %vm961 = vcmp.eq.f32.partialorder %v960, 8.507059e+37
    %v962 = vand.u32 %v809, 2147483648
    %v963 = vor.u32 1.1754944e-38, %v962
    %v964 = vsel %vm961, %v963, %v959
    %v965 = vmul.f32 %v755, %v964
    %v966 = vrcp.pop %v810
    %v967 = vmul.f32 %v810, %v966
    %v968 = vsub.f32 1.0, %v967
    %v969 = vmul.f32 %v966, %v968
    %v970 = vadd.f32 %v966, %v969
    %vm971 = vweird.f32 %v810
    %vm972 = vweird.f32 %v966
    %vm973 = vmor %vm971, %vm972
    %v974 = vsel %vm973, %v966, %v970
    %v975 = vand.u32 2147483647, %v810
    %vm976 = vcmp.eq.f32.partialorder %v975, 8.507059e+37
    %v977 = vand.u32 %v810, 2147483648
    %v978 = vor.u32 1.1754944e-38, %v977
    %v979 = vsel %vm976, %v978, %v974
    %v980 = vmul.f32 %v757, %v979
    %v981 = vrcp.pop %v811
    %v982 = vmul.f32 %v811, %v981
    %v983 = vsub.f32 1.0, %v982
    %v984 = vmul.f32 %v981, %v983
    %v985 = vadd.f32 %v981, %v984
    %vm986 = vweird.f32 %v811
    %vm987 = vweird.f32 %v981
    %vm988 = vmor %vm986, %vm987
    %v989 = vsel %vm988, %v981, %v985
    %v990 = vand.u32 2147483647, %v811
    %vm991 = vcmp.eq.f32.partialorder %v990, 8.507059e+37
    %v992 = vand.u32 %v811, 2147483648
    %v993 = vor.u32 1.1754944e-38, %v992
    %v994 = vsel %vm991, %v993, %v989
    %v995 = vmul.f32 %v759, %v994
    %v996 = vrcp.pop %v812
    %v997 = vmul.f32 %v812, %v996
    %v998 = vsub.f32 1.0, %v997
    %v999 = vmul.f32 %v996, %v998
    %v1000 = vadd.f32 %v996, %v999
    %vm1001 = vweird.f32 %v812
    %vm1002 = vweird.f32 %v996
    %vm1003 = vmor %vm1001, %vm1002
    %v1004 = vsel %vm1003, %v996, %v1000
    %v1005 = vand.u32 2147483647, %v812
    %vm1006 = vcmp.eq.f32.partialorder %v1005, 8.507059e+37
    %v1007 = vand.u32 %v812, 2147483648
    %v1008 = vor.u32 1.1754944e-38, %v1007
    %v1009 = vsel %vm1006, %v1008, %v1004
    %v1010 = vmul.f32 %v761, %v1009
    %v1011 = vrcp.pop %v813
    %v1012 = vmul.f32 %v813, %v1011
    %v1013 = vsub.f32 1.0, %v1012
    %v1014 = vmul.f32 %v1011, %v1013
    %v1015 = vadd.f32 %v1011, %v1014
    %vm1016 = vweird.f32 %v813
    %vm1017 = vweird.f32 %v1011
    %vm1018 = vmor %vm1016, %vm1017
    %v1019 = vsel %vm1018, %v1011, %v1015
    %v1020 = vand.u32 2147483647, %v813
    %vm1021 = vcmp.eq.f32.partialorder %v1020, 8.507059e+37
    %v1022 = vand.u32 %v813, 2147483648
    %v1023 = vor.u32 1.1754944e-38, %v1022
    %v1024 = vsel %vm1021, %v1023, %v1019
    %v1025 = vmul.f32 %v763, %v1024
    %v1026 = vrcp.pop %v814
    %v1027 = vmul.f32 %v814, %v1026
    %v1028 = vsub.f32 1.0, %v1027
    %v1029 = vmul.f32 %v1026, %v1028
    %v1030 = vadd.f32 %v1026, %v1029
    %vm1031 = vweird.f32 %v814
    %vm1032 = vweird.f32 %v1026
    %vm1033 = vmor %vm1031, %vm1032
    %v1034 = vsel %vm1033, %v1026, %v1030
    %v1035 = vand.u32 2147483647, %v814
    %vm1036 = vcmp.eq.f32.partialorder %v1035, 8.507059e+37
    %v1037 = vand.u32 %v814, 2147483648
    %v1038 = vor.u32 1.1754944e-38, %v1037
    %v1039 = vsel %vm1036, %v1038, %v1034
    %v1040 = vmul.f32 %v765, %v1039
    %v1041 = vrcp.pop %v815
    %v1042 = vmul.f32 %v815, %v1041
    %v1043 = vsub.f32 1.0, %v1042
    %v1044 = vmul.f32 %v1041, %v1043
    %v1045 = vadd.f32 %v1041, %v1044
    %vm1046 = vweird.f32 %v815
    %vm1047 = vweird.f32 %v1041
    %vm1048 = vmor %vm1046, %vm1047
    %v1049 = vsel %vm1048, %v1041, %v1045
    %v1050 = vand.u32 2147483647, %v815
    %vm1051 = vcmp.eq.f32.partialorder %v1050, 8.507059e+37
    %v1052 = vand.u32 %v815, 2147483648
    %v1053 = vor.u32 1.1754944e-38, %v1052
    %v1054 = vsel %vm1051, %v1053, %v1049
    %v1055 = vmul.f32 %v767, %v1054
    %v1056 = vmul.f32 %v769, %v829
    %v1057 = vmul.f32 %v771, %v844
    %v1058 = vmul.f32 %v773, %v859
    %v1059 = vmul.f32 %v775, %v874
    %v1060 = vmul.f32 %v777, %v889
    %v1061 = vmul.f32 %v779, %v904
    %v1062 = vmul.f32 %v781, %v919
    %v1063 = vmul.f32 %v783, %v934
    %v1064 = vmul.f32 %v785, %v949
    %v1065 = vmul.f32 %v787, %v964
    %v1066 = vmul.f32 %v789, %v979
    %v1067 = vmul.f32 %v791, %v994
    %v1068 = vmul.f32 %v793, %v1009
    %v1069 = vmul.f32 %v795, %v1024
    %v1070 = vmul.f32 %v797, %v1039
    %v1071 = vmul.f32 %v799, %v1054
    %v1072 = vld [vmem:[#allocation2] sm:$0x3]
    %v1073 = vmul.f32 %v830, %v50
    %v1074 = vmul.f32 %v845, %v51
    %v1075 = vmul.f32 %v860, %v52
    %v1076 = vmul.f32 %v875, %v53
    %v1077 = vmul.f32 %v890, %v54
    %v1078 = vmul.f32 %v905, %v55
    %v1079 = vmul.f32 %v920, %v56
    %v1080 = vmul.f32 %v935, %v57
    %v1081 = vmul.f32 %v950, %v58
    %v1082 = vmul.f32 %v965, %v59
    %v1083 = vmul.f32 %v980, %v60
    %v1084 = vmul.f32 %v995, %v61
    %v1085 = vmul.f32 %v1010, %v62
    %v1086 = vmul.f32 %v1025, %v63
    %v1087 = vmul.f32 %v1040, %v64
    %v1088 = vmul.f32 %v1055, %v65
    %v1089 = vmul.f32 %v1056, %v66
    %v1090 = vmul.f32 %v1057, %v67
    %v1091 = vmul.f32 %v1058, %v68
    %v1092 = vmul.f32 %v1059, %v69
    %v1093 = vmul.f32 %v1060, %v70
    %v1094 = vmul.f32 %v1061, %v71
    %v1095 = vmul.f32 %v1062, %v72
    %v1096 = vmul.f32 %v1063, %v73
    %v1097 = vmul.f32 %v1064, %v74
    %v1098 = vmul.f32 %v1065, %v75
    %v1099 = vmul.f32 %v1066, %v76
    %v1100 = vmul.f32 %v1067, %v77
    %v1101 = vmul.f32 %v1068, %v78
    %v1102 = vmul.f32 %v1069, %v79
    %v1103 = vmul.f32 %v1070, %v80
    %v1104 = vmul.f32 %v1071, %v81
    %v1105 = vsel %vm90, %v1073, 0.0
    %v1106 = vsel %vm90, %v1074, 0.0
    %v1107 = vadd.f32 %v1105, %v1106
    %v1108 = vsel %vm90, %v1075, 0.0
    %v1109 = vadd.f32 %v1107, %v1108
    %v1110 = vsel %vm90, %v1076, 0.0
    %v1111 = vadd.f32 %v1109, %v1110
    %v1112 = vsel %vm90, %v1077, 0.0
    %v1113 = vadd.f32 %v1111, %v1112
    %v1114 = vsel %vm90, %v1078, 0.0
    %v1115 = vadd.f32 %v1113, %v1114
    %v1116 = vsel %vm90, %v1079, 0.0
    %v1117 = vadd.f32 %v1115, %v1116
    %v1118 = vsel %vm90, %v1080, 0.0
    %v1119 = vadd.f32 %v1117, %v1118
    %v1120 = vsel %vm90, %v1081, 0.0
    %v1121 = vadd.f32 %v1119, %v1120
    %v1122 = vsel %vm90, %v1082, 0.0
    %v1123 = vadd.f32 %v1121, %v1122
    %v1124 = vsel %vm90, %v1083, 0.0
    %v1125 = vadd.f32 %v1123, %v1124
    %v1126 = vsel %vm90, %v1084, 0.0
    %v1127 = vadd.f32 %v1125, %v1126
    %v1128 = vsel %vm90, %v1085, 0.0
    %v1129 = vadd.f32 %v1127, %v1128
    %v1130 = vsel %vm90, %v1086, 0.0
    %v1131 = vadd.f32 %v1129, %v1130
    %v1132 = vsel %vm90, %v1087, 0.0
    %v1133 = vadd.f32 %v1131, %v1132
    %v1134 = vsel %vm90, %v1088, 0.0
    %v1135 = vadd.f32 %v1133, %v1134
    %v1136 = vrot.slane %v1135, 4
    %v1137 = vadd.f32 %v1135, %v1136
    %v1138 = vrot.slane %v1137, 2
    %v1139 = vadd.f32 %v1137, %v1138
    %v1140 = vrot.slane %v1139, 1
    %v1141 = vadd.f32 %v1139, %v1140
    %v1142 = vsel %vm90, %v1089, 0.0
    %v1143 = vsel %vm90, %v1090, 0.0
    %v1144 = vadd.f32 %v1142, %v1143
    %v1145 = vsel %vm90, %v1091, 0.0
    %v1146 = vadd.f32 %v1144, %v1145
    %v1147 = vsel %vm90, %v1092, 0.0
    %v1148 = vadd.f32 %v1146, %v1147
    %v1149 = vsel %vm90, %v1093, 0.0
    %v1150 = vadd.f32 %v1148, %v1149
    %v1151 = vsel %vm90, %v1094, 0.0
    %v1152 = vadd.f32 %v1150, %v1151
    %v1153 = vsel %vm90, %v1095, 0.0
    %v1154 = vadd.f32 %v1152, %v1153
    %v1155 = vsel %vm90, %v1096, 0.0
    %v1156 = vadd.f32 %v1154, %v1155
    %v1157 = vsel %vm90, %v1097, 0.0
    %v1158 = vadd.f32 %v1156, %v1157
    %v1159 = vsel %vm90, %v1098, 0.0
    %v1160 = vadd.f32 %v1158, %v1159
    %v1161 = vsel %vm90, %v1099, 0.0
    %v1162 = vadd.f32 %v1160, %v1161
    %v1163 = vsel %vm90, %v1100, 0.0
    %v1164 = vadd.f32 %v1162, %v1163
    %v1165 = vsel %vm90, %v1101, 0.0
    %v1166 = vadd.f32 %v1164, %v1165
    %v1167 = vsel %vm90, %v1102, 0.0
    %v1168 = vadd.f32 %v1166, %v1167
    %v1169 = vsel %vm90, %v1103, 0.0
    %v1170 = vadd.f32 %v1168, %v1169
    %v1171 = vsel %vm90, %v1104, 0.0
    %v1172 = vadd.f32 %v1170, %v1171
    %v1173 = vrot.slane %v1172, 4
    %v1174 = vadd.f32 %v1172, %v1173
    %v1175 = vrot.slane %v1174, 2
    %v1176 = vadd.f32 %v1174, %v1175
    %v1177 = vrot.slane %v1176, 1
    %v1178 = vadd.f32 %v1176, %v1177
    %vm1181 = vcmask 1041409
    %v1182 = vsel %vm1181, %v1178, %v1141
    %v1184 = vadd.f32 %v1072, %v1182
    %vm1185 = vcmask 254976
    %1186 = vst.msk [vmem:[#allocation2] sm:$0x3] %vm1185, %v1184
    %v1219 = vlaneseq
    %v1220 = vand.u32 %v1219, 127
    %v1221 = vperm.slane %v830, %v1220
    %v1222 = vadd.s32 %v1220, 4294967288
    %v1223 = vperm.slane %v845, %v1222
    %vm1224 = vcmask 130112
    %v1225 = vsel %vm1224, %v1223, %v1221
    %v1226 = vadd.s32 %v1220, 4294967280
    %v1227 = vperm.slane %v860, %v1226
    %vm1228 = vcmask 195712
    %v1229 = vsel %vm1228, %v1227, %v1225
    %v1230 = vadd.s32 %v1220, 4294967272
    %v1231 = vperm.slane %v875, %v1230
    %vm1232 = vcmask 261312
    %v1233 = vsel %vm1232, %v1231, %v1229
    %v1234 = vadd.s32 %v1220, 4294967264
    %v1235 = vperm.slane %v890, %v1234
    %vm1236 = vcmask 326912
    %v1237 = vsel %vm1236, %v1235, %v1233
    %v1238 = vadd.s32 %v1220, 4294967256
    %v1239 = vperm.slane %v905, %v1238
    %vm1240 = vcmask 392512
    %v1241 = vsel %vm1240, %v1239, %v1237
    %v1242 = vadd.s32 %v1220, 4294967248
    %v1243 = vperm.slane %v920, %v1242
    %vm1244 = vcmask 458112
    %v1245 = vsel %vm1244, %v1243, %v1241
    %v1246 = vadd.s32 %v1220, 4294967240
    %v1247 = vperm.slane %v935, %v1246
    %vm1248 = vcmask 523712
    %v1249 = vsel %vm1248, %v1247, %v1245
    %v1250 = vadd.s32 %v1220, 4294967232
    %v1251 = vperm.slane %v950, %v1250
    %vm1252 = vcmask 589312
    %v1253 = vsel %vm1252, %v1251, %v1249
    %v1254 = vadd.s32 %v1220, 4294967224
    %v1255 = vperm.slane %v965, %v1254
    %vm1256 = vcmask 654912
    %v1257 = vsel %vm1256, %v1255, %v1253
    %v1258 = vadd.s32 %v1220, 4294967216
    %v1259 = vperm.slane %v980, %v1258
    %vm1260 = vcmask 720512
    %v1261 = vsel %vm1260, %v1259, %v1257
    %v1262 = vadd.s32 %v1220, 4294967208
    %v1263 = vperm.slane %v995, %v1262
    %vm1264 = vcmask 786112
    %v1265 = vsel %vm1264, %v1263, %v1261
    %v1266 = vadd.s32 %v1220, 4294967200
    %v1267 = vperm.slane %v1010, %v1266
    %vm1268 = vcmask 851712
    %v1269 = vsel %vm1268, %v1267, %v1265
    %v1270 = vadd.s32 %v1220, 4294967192
    %v1271 = vperm.slane %v1025, %v1270
    %vm1272 = vcmask 917312
    %v1273 = vsel %vm1272, %v1271, %v1269
    %v1274 = vadd.s32 %v1220, 4294967184
    %v1275 = vperm.slane %v1040, %v1274
    %vm1276 = vcmask 982912
    %v1277 = vsel %vm1276, %v1275, %v1273
    %v1278 = vadd.s32 %v1220, 4294967176
    %v1279 = vperm.slane %v1055, %v1278
    %vm1280 = vcmask 1048512
    %v1281 = vsel %vm1280, %v1279, %v1277
    %v1282 = vperm.slane %v1056, %v1220
    %v1283 = vperm.slane %v1057, %v1222
    %v1284 = vsel %vm1224, %v1283, %v1282
    %v1285 = vperm.slane %v1058, %v1226
    %v1286 = vsel %vm1228, %v1285, %v1284
    %v1287 = vperm.slane %v1059, %v1230
    %v1288 = vsel %vm1232, %v1287, %v1286
    %v1289 = vperm.slane %v1060, %v1234
    %v1290 = vsel %vm1236, %v1289, %v1288
    %v1291 = vperm.slane %v1061, %v1238
    %v1292 = vsel %vm1240, %v1291, %v1290
    %v1293 = vperm.slane %v1062, %v1242
    %v1294 = vsel %vm1244, %v1293, %v1292
    %v1295 = vperm.slane %v1063, %v1246
    %v1296 = vsel %vm1248, %v1295, %v1294
    %v1297 = vperm.slane %v1064, %v1250
    %v1298 = vsel %vm1252, %v1297, %v1296
    %v1299 = vperm.slane %v1065, %v1254
    %v1300 = vsel %vm1256, %v1299, %v1298
    %v1301 = vperm.slane %v1066, %v1258
    %v1302 = vsel %vm1260, %v1301, %v1300
    %v1303 = vperm.slane %v1067, %v1262
    %v1304 = vsel %vm1264, %v1303, %v1302
    %v1305 = vperm.slane %v1068, %v1266
    %v1306 = vsel %vm1268, %v1305, %v1304
    %v1307 = vperm.slane %v1069, %v1270
    %v1308 = vsel %vm1272, %v1307, %v1306
    %v1309 = vperm.slane %v1070, %v1274
    %v1310 = vsel %vm1276, %v1309, %v1308
    %v1311 = vperm.slane %v1071, %v1278
    %v1312 = vsel %vm1280, %v1311, %v1310
    %v1313 = vsel %vm1181, %v1312, %v1281
    %1315 = vst [vmem:[#allocation4] sm:$0x3] %v1313
    // Predicated region
    $region22: #{tpu_custom_call.1} parent=1 // pred_check
      _
    $region23: #{tpu_custom_call.1} parent=1 // pred_check_branch
      %1317 = sbr.rel (0) target = $region25
    $region24: #{tpu_custom_call.1} parent=1 // pred_region
      %1319 = vsyncadd [#allocation3], 0
      %s1321 = sshll.u32 [#allocation2], 4
      %s1322 = int_to_ptr.vmem [resolvable:$true] %s1321
      %s1323 = sshll.u32 %s4, 4
      %s1324 = int_to_ptr.hbm [resolvable:$true] %s1323
      %1326 = dma.vmem_to_hbm [thread:$0]  %s1322, 32, %s1324, [#allocation3]
    $region25: #{tpu_custom_call.1} parent=1 // pred_fallthru
      _
    // Predicated region
    $region26: #{tpu_custom_call.1} parent=1 // pred_check
      _
    $region27: #{tpu_custom_call.1} parent=1 // pred_check_branch
      %1328 = sbr.rel (0) target = $region29
    $region28: #{tpu_custom_call.1} parent=1 // pred_region
      %s1329 = sadd.s32 0, 0
      %1331 = vsyncadd [#allocation5], 0
      %s1332 = smul.addr %s1329, 2
      %s1333 = scalar_lea.hbm %s5, %s1332
      %s1335 = sshll.u32 [#allocation4], 4
      %s1336 = int_to_ptr.vmem [resolvable:$true] %s1335
      %s1337 = sshll.u32 %s1333, 4
      %s1338 = int_to_ptr.hbm [resolvable:$true] %s1337
      %1340 = dma.vmem_to_hbm [thread:$0]  %s1336, 32, %s1338, [#allocation5]
    $region29: #{tpu_custom_call.1} parent=1 // pred_fallthru
      _
    // Predicated region
    $region30: #{tpu_custom_call.1} parent=1 // pred_check
      _
    $region31: #{tpu_custom_call.1} parent=1 // pred_check_branch
      %1342 = sbr.rel (0) target = $region33
    $region32: #{tpu_custom_call.1} parent=1 // pred_region
      %1344 = dma.done [#allocation3], 32
    $region33: #{tpu_custom_call.1} parent=1 // pred_fallthru
      _
    // Predicated region
    $region34: #{tpu_custom_call.1} parent=1 // pred_check
      _
    $region35: #{tpu_custom_call.1} parent=1 // pred_check_branch
      %1346 = sbr.rel (0) target = $region37
    $region36: #{tpu_custom_call.1} parent=1 // pred_region
      %1348 = dma.done [#allocation5], 32
    $region37: #{tpu_custom_call.1} parent=1 // pred_fallthru
      _
    %1349 = vsyncpa [#allocation3], 1
    %1350 = vsyncpa [#allocation5], 1

</llo_original>
